<compile_context>
chip_gen: v6e
topology: v6e:2x2x1
jax: 0.10.0
libtpu: 0.0.40
codegen_flags: <defaults>
</compile_context>

<pallas_src>
import functools

import jax
import jax.numpy as jnp
from jax import lax
from jax.experimental import pallas as pl
from jax.experimental.pallas import tpu as pltpu


def _round_up(x, m):
    return ((x + m - 1) // m) * m


def _bmmf_kernel(x_ref,                # [tb, tk]  gathered interaction-row tile (compute dtype)
                 feat_ref,             # [tk, D]   modality feature tile        (compute dtype)
                 wb_ref, bb_ref,       # [D, D] (out, in) compute dtype, [1, D] f32
                 wf_ref, bf_ref,       # [D, D] (out, in) compute dtype, [1, D] f32
                 biased_ref,           # [tb, D] f32 out
                 filtered_ref,         # [tb, D] f32 out
                 cfr_ref, cbf_ref,     # [tb, 1] f32 per-row cosine terms
                 umf_acc):             # VMEM scratch [tb, D] f32
    k = pl.program_id(1)

    @pl.when(k == 0)
    def _():
        umf_acc[...] = jnp.zeros_like(umf_acc)

    # Partial user-modality features: [tb, tk] @ [tk, D] on the MXU, f32 accumulate.
    umf_acc[...] += jnp.dot(x_ref[...], feat_ref[...],
                            preferred_element_type=jnp.float32)

    @pl.when(k == pl.num_programs(1) - 1)
    def _():
        umf = umf_acc[...]                                     # [tb, D] f32
        cd = wb_ref.dtype

        # nn.Linear: y = x @ W.T + b with W stored (out, in) -> contract dim 1 of
        # both operands directly (no transpose copy anywhere).
        dn = (((1,), (1,)), ((), ()))
        biased = lax.dot_general(umf.astype(cd), wb_ref[...], dn,
                                 preferred_element_type=jnp.float32) + bb_ref[...]
        filtered = lax.dot_general(umf.astype(cd), wf_ref[...], dn,
                                   preferred_element_type=jnp.float32) + bf_ref[...]

        biased_ref[...] = biased.astype(biased_ref.dtype)
        filtered_ref[...] = filtered.astype(filtered_ref.dtype)

        # Cosine epilogue: hoist the shared ||filtered||^2, use exact rsqrt (EUP).
        # torch clamps each norm at eps = 1e-8 -> clamp sum-of-squares at eps^2.
        eps2 = jnp.float32(1e-16)
        ss_f = jnp.sum(filtered * filtered, axis=-1, keepdims=True)
        ss_u = jnp.sum(umf * umf, axis=-1, keepdims=True)
        ss_b = jnp.sum(biased * biased, axis=-1, keepdims=True)
        inv_f = lax.rsqrt(jnp.maximum(ss_f, eps2))
        inv_u = lax.rsqrt(jnp.maximum(ss_u, eps2))
        inv_b = lax.rsqrt(jnp.maximum(ss_b, eps2))

        cfr_ref[...] = jnp.sum(filtered * umf, axis=-1, keepdims=True) * inv_f * inv_u
        cbf_ref[...] = jnp.sum(biased * filtered, axis=-1, keepdims=True) * inv_b * inv_f


def _pick_tiles(batch, n_items, d, itemsize, budget_bytes=12 * 1024 * 1024):
    """Batch tile (sublane-aligned, <=256) and item-reduction tile (lane-aligned,
    <=2048) sized so the double-buffered x + feat tiles stay well inside VMEM."""
    tb = min(_round_up(max(batch, 1), 8), 256)
    max_tk = budget_bytes // max(1, 2 * (tb + d) * itemsize)   # incl. double-buffer
    tk = max(128, min(2048, (max_tk // 128) * 128))
    tk = min(tk, _round_up(n_items, 128))
    return tb, tk


@functools.partial(jax.jit, static_argnames=("compute_dtype",))
def bmmf_filters_forward(users, interaction_matrix, feat, wb, bb, wf, bf,
                         compute_dtype=jnp.bfloat16):
    """Returns (loss [scalar], biased_embedding [B, D] f32, filtered_embedding [B, D] f32).

    wb / wf are nn.Linear weights of shape (out, in); bb / bf are (D,) biases.
    """
    n_users, n_items = interaction_matrix.shape
    D = feat.shape[1]
    B = users.shape[0]
    itemsize = jnp.dtype(compute_dtype).itemsize

    tb, tk = _pick_tiles(B, n_items, D, itemsize)
    Bp = _round_up(B, tb)
    Sp = _round_up(n_items, tk)
    nb, nk = Bp // tb, Sp // tk

    # User-row gather done once on the host side of the kernel (XLA gather),
    # so the kernel tiles a dense [Bp, Sp] operand.  Padded rows/cols are zero
    # and contribute nothing to umf.
    users_i = users.astype(jnp.int32)
    x_rows = jnp.take(interaction_matrix, users_i, axis=0).astype(compute_dtype)
    if Bp != B or Sp != n_items:
        x_rows = jnp.pad(x_rows, ((0, Bp - B), (0, Sp - n_items)))
    feat_c = feat.astype(compute_dtype)
    if Sp != n_items:
        feat_c = jnp.pad(feat_c, ((0, Sp - n_items), (0, 0)))

    # TODO(synk): very large D (e.g. 4096-dim visual features) would need the
    # Linear weights tiled over their output dim as well; they are kept fully
    # VMEM-resident here.
    vmem_bytes = (2 * itemsize * (tb * tk + tk * D)          # x + feat, double-buffered
                  + 2 * 2 * itemsize * D * D + 2 * 2 * 4 * D  # weights + biases
                  + 4 * (3 * tb * D + 2 * tb) * 2)            # outputs + accumulator
    vmem_limit = int(min(64 * 1024 * 1024,
                         max(32 * 1024 * 1024, int(vmem_bytes * 1.5))))

    cost = pl.CostEstimate(
        flops=2 * Bp * Sp * D + 4 * Bp * D * D,
        transcendentals=3 * Bp,
        bytes_accessed=itemsize * (Bp * Sp + nb * Sp * D + 2 * nb * D * D)
                       + 4 * (2 * D + Bp * (2 * D + 2)),
    )

    grid_spec = pltpu.PrefetchScalarGridSpec(
        num_scalar_prefetch=0,
        grid=(nb, nk),
        in_specs=[
            pl.BlockSpec((tb, tk), lambda b, k: (b, k)),   # gathered interaction rows
            pl.BlockSpec((tk, D), lambda b, k: (k, 0)),    # feat reduction tile
            pl.BlockSpec((D, D), lambda b, k: (0, 0)),     # Wb (out, in)
            pl.BlockSpec((1, D), lambda b, k: (0, 0)),     # bb
            pl.BlockSpec((D, D), lambda b, k: (0, 0)),     # Wf (out, in)
            pl.BlockSpec((1, D), lambda b, k: (0, 0)),     # bf
        ],
        out_specs=(
            pl.BlockSpec((tb, D), lambda b, k: (b, 0)),
            pl.BlockSpec((tb, D), lambda b, k: (b, 0)),
            pl.BlockSpec((tb, 1), lambda b, k: (b, 0)),
            pl.BlockSpec((tb, 1), lambda b, k: (b, 0)),
        ),
        scratch_shapes=[pltpu.VMEM((tb, D), jnp.float32)],
    )

    biased_p, filtered_p, cos_fr, cos_bf = pl.pallas_call(
        _bmmf_kernel,
        grid_spec=grid_spec,
        out_shape=(
            jax.ShapeDtypeStruct((Bp, D), jnp.float32),
            jax.ShapeDtypeStruct((Bp, D), jnp.float32),
            jax.ShapeDtypeStruct((Bp, 1), jnp.float32),
            jax.ShapeDtypeStruct((Bp, 1), jnp.float32),
        ),
        compiler_params=pltpu.CompilerParams(
            dimension_semantics=("parallel", "arbitrary"),
            vmem_limit_bytes=vmem_limit,
        ),
        cost_estimate=cost,
    )(
        x_rows,
        feat_c,
        wb.astype(compute_dtype),                 # (out, in) -- contracted on dim 1 in-kernel
        bb.reshape(1, D).astype(jnp.float32),
        wf.astype(compute_dtype),
        bf.reshape(1, D).astype(jnp.float32),
    )

    biased = biased_p[:B]
    filtered = filtered_p[:B]

    # CosineEmbeddingLoss(target=+1): mean(1 - cos); (target=-1, margin=0): mean(max(0, cos)).
    loss = (jnp.mean(1.0 - cos_fr[:B])
            + 0.1 * jnp.mean(jnp.maximum(cos_bf[:B], 0.0)))
    return loss, biased, filtered


def _reference(users, interaction_matrix, feat, wb, bb, wf, bf):
    x_rows = jnp.take(interaction_matrix, users, axis=0)
    umf = x_rows @ feat
    biased = umf @ wb.T + bb
    filtered = umf @ wf.T + bf
    eps = 1e-8

    def cos(a, b):
        num = jnp.sum(a * b, axis=-1)
        na = jnp.maximum(jnp.linalg.norm(a, axis=-1), eps)
        nb = jnp.maximum(jnp.linalg.norm(b, axis=-1), eps)
        return num / (na * nb)

    l1 = jnp.mean(1.0 - cos(filtered, umf))
    l2 = jnp.mean(jnp.maximum(cos(biased, filtered), 0.0))
    return l1 + 0.1 * l2, biased, filtered


if __name__ == "__main__":
    key = jax.random.PRNGKey(0)
    n_users, n_items, embed_dim, batch = 16, 64, 32, 8
    k1, k2, k3, k4, k5, k6, k7 = jax.random.split(key, 7)

    # synthetic binary interaction matrix, row-normalized like the module
    inter = (jax.random.uniform(k1, (n_users, n_items)) < 0.25).astype(jnp.float32)
    inter = inter.at[:, 0].set(1.0)  # avoid all-zero rows (div-by-zero)
    inter = inter / jnp.sum(inter, axis=-1, keepdims=True)

    feat = jax.random.normal(k2, (n_items, embed_dim), dtype=jnp.float32)

    # nn.Linear-style params: weight (out, in), bias (out,)
    bound = 1.0 / jnp.sqrt(embed_dim)
    wb = jax.random.uniform(k3, (embed_dim, embed_dim), minval=-bound, maxval=bound)
    bb = jax.random.uniform(k4, (embed_dim,), minval=-bound, maxval=bound)
    wf = jax.random.uniform(k5, (embed_dim, embed_dim), minval=-bound, maxval=bound)
    bf = jax.random.uniform(k6, (embed_dim,), minval=-bound, maxval=bound)

    users = jax.random.randint(k7, (batch,), 0, n_users)

    ref_loss, ref_b, ref_f = _reference(users, inter, feat, wb, bb, wf, bf)

    # Exact (f32) MXU-input path: must match the module math tightly.
    loss32, b32, f32_ = bmmf_filters_forward(users, inter, feat, wb, bb, wf, bf,
                                             compute_dtype=jnp.float32)
    jax.block_until_ready((loss32, b32, f32_))
    assert jnp.allclose(loss32, ref_loss, atol=1e-4, rtol=1e-4)
    assert jnp.allclose(b32, ref_b, atol=1e-4, rtol=1e-4)
    assert jnp.allclose(f32_, ref_f, atol=1e-4, rtol=1e-4)

    # bf16 MXU-input / f32-accumulate path (the default for training-scale runs).
    loss16, b16, f16 = bmmf_filters_forward(users, inter, feat, wb, bb, wf, bf,
                                            compute_dtype=jnp.bfloat16)
    jax.block_until_ready((loss16, b16, f16))
    assert jnp.allclose(loss16, ref_loss, atol=5e-2, rtol=5e-2)
    assert jnp.allclose(b16, ref_b, atol=5e-2, rtol=5e-2)
    assert jnp.allclose(f16, ref_f, atol=5e-2, rtol=5e-2)

    print("KERNEL_OK")
</pallas_src>

<mosaic_0001>
module attributes {stable_mosaic.version = 11 : i64} {
  func.func @_bmmf_kernel(%arg0: i32, %arg1: i32, %arg2: memref<8x128xf32, #tpu.memory_space<vmem>>, %arg3: memref<128x32xf32, #tpu.memory_space<vmem>>, %arg4: memref<32x32xf32, #tpu.memory_space<vmem>>, %arg5: memref<1x32xf32, #tpu.memory_space<vmem>>, %arg6: memref<32x32xf32, #tpu.memory_space<vmem>>, %arg7: memref<1x32xf32, #tpu.memory_space<vmem>>, %arg8: memref<8x32xf32, #tpu.memory_space<vmem>>, %arg9: memref<8x32xf32, #tpu.memory_space<vmem>>, %arg10: memref<8x1xf32, #tpu.memory_space<vmem>>, %arg11: memref<8x1xf32, #tpu.memory_space<vmem>>, %arg12: memref<8x32xf32, #tpu.memory_space<vmem>>) attributes {dimension_semantics = [#tpu.dimension_semantics<parallel>, #tpu.dimension_semantics<arbitrary>], iteration_bounds = array<i64: 1, 1>, scalar_prefetch = 0 : i64, scratch_operands = 1 : i64, tpu.core_type = #tpu.core_type<tc>, window_params = [{transform_indices = @transform_0, window_bounds = array<i64: 8, 128>}, {transform_indices = @transform_1, window_bounds = array<i64: 128, 32>}, {pipeline_mode = #tpu.pipeline_mode<synchronous>, transform_indices = @transform_2, window_bounds = array<i64: 32, 32>}, {pipeline_mode = #tpu.pipeline_mode<synchronous>, transform_indices = @transform_3, window_bounds = array<i64: 1, 32>}, {pipeline_mode = #tpu.pipeline_mode<synchronous>, transform_indices = @transform_4, window_bounds = array<i64: 32, 32>}, {pipeline_mode = #tpu.pipeline_mode<synchronous>, transform_indices = @transform_5, window_bounds = array<i64: 1, 32>}, {transform_indices = @transform_6, window_bounds = array<i64: 8, 32>}, {transform_indices = @transform_7, window_bounds = array<i64: 8, 32>}, {transform_indices = @transform_8, window_bounds = array<i64: 8, 1>}, {transform_indices = @transform_9, window_bounds = array<i64: 8, 1>}]} {
    %c0_i32 = arith.constant 0 : i32
    %0 = arith.cmpi eq, %arg1, %c0_i32 : i32
    %1 = arith.extui %0 : i1 to i32
    %c0_i32_0 = arith.constant 0 : i32
    %2 = arith.cmpi ne, %1, %c0_i32_0 : i32
    scf.if %2 {
      %cst_10 = arith.constant 0.000000e+00 : f32
      %12 = vector.broadcast %cst_10 : f32 to vector<8x32xf32>
      %c0_11 = arith.constant 0 : index
      %c0_12 = arith.constant 0 : index
      %13 = vector.load %arg12[%c0_11, %c0_12] : memref<8x32xf32, #tpu.memory_space<vmem>>, vector<8x32xf32>
      tpu.vector_store %arg12[%c0_11, %c0_12], %12 {strides = array<i32>} : memref<8x32xf32, #tpu.memory_space<vmem>>, vector<8x32xf32>,
    } else {
    }
    %c0 = arith.constant 0 : index
    %c0_1 = arith.constant 0 : index
    %3 = vector.load %arg12[%c0, %c0_1] : memref<8x32xf32, #tpu.memory_space<vmem>>, vector<8x32xf32>
    %c0_2 = arith.constant 0 : index
    %c0_3 = arith.constant 0 : index
    %4 = vector.load %arg2[%c0_2, %c0_3] : memref<8x128xf32, #tpu.memory_space<vmem>>, vector<8x128xf32>
    %c0_4 = arith.constant 0 : index
    %c0_5 = arith.constant 0 : index
    %5 = vector.load %arg3[%c0_4, %c0_5] : memref<128x32xf32, #tpu.memory_space<vmem>>, vector<128x32xf32>
    %cst = arith.constant dense<0.000000e+00> : vector<8x32xf32>
    %6 = tpu.matmul %4, %5, %cst {dimension_numbers = #tpu.dot_dimension_numbers<[1], [0], [0], [1], [0, 0, 1, 1], [], []>} : vector<8x128xf32>, vector<128x32xf32>, vector<8x32xf32> -> vector<8x32xf32>
    %7 = arith.addf %3, %6 : vector<8x32xf32>
    %c0_6 = arith.constant 0 : index
    %c0_7 = arith.constant 0 : index
    %8 = vector.load %arg12[%c0_6, %c0_7] : memref<8x32xf32, #tpu.memory_space<vmem>>, vector<8x32xf32>
    tpu.vector_store %arg12[%c0_6, %c0_7], %7 {strides = array<i32>} : memref<8x32xf32, #tpu.memory_space<vmem>>, vector<8x32xf32>,
    %c0_i32_8 = arith.constant 0 : i32
    %9 = arith.cmpi eq, %arg1, %c0_i32_8 : i32
    %10 = arith.extui %9 : i1 to i32
    %c0_i32_9 = arith.constant 0 : i32
    %11 = arith.cmpi ne, %10, %c0_i32_9 : i32
    scf.if %11 {
      %c0_10 = arith.constant 0 : index
      %c0_11 = arith.constant 0 : index
      %12 = vector.load %arg12[%c0_10, %c0_11] : memref<8x32xf32, #tpu.memory_space<vmem>>, vector<8x32xf32>
      %c0_12 = arith.constant 0 : index
      %c0_13 = arith.constant 0 : index
      %13 = vector.load %arg4[%c0_12, %c0_13] : memref<32x32xf32, #tpu.memory_space<vmem>>, vector<32x32xf32>
      %cst_14 = arith.constant dense<0.000000e+00> : vector<8x32xf32>
      %14 = tpu.matmul %12, %13, %cst_14 {dimension_numbers = #tpu.dot_dimension_numbers<[1], [1], [0], [0], [0, 0, 1, 0], [], []>} : vector<8x32xf32>, vector<32x32xf32>, vector<8x32xf32> -> vector<8x32xf32>
      %c0_15 = arith.constant 0 : index
      %c0_16 = arith.constant 0 : index
      %15 = vector.load %arg5[%c0_15, %c0_16] : memref<1x32xf32, #tpu.memory_space<vmem>>, vector<1x32xf32>
      %16 = vector.broadcast %15 : vector<1x32xf32> to vector<8x32xf32>
      %17 = arith.addf %14, %16 : vector<8x32xf32>
      %c0_17 = arith.constant 0 : index
      %c0_18 = arith.constant 0 : index
      %18 = vector.load %arg6[%c0_17, %c0_18] : memref<32x32xf32, #tpu.memory_space<vmem>>, vector<32x32xf32>
      %cst_19 = arith.constant dense<0.000000e+00> : vector<8x32xf32>
      %19 = tpu.matmul %12, %18, %cst_19 {dimension_numbers = #tpu.dot_dimension_numbers<[1], [1], [0], [0], [0, 0, 1, 0], [], []>} : vector<8x32xf32>, vector<32x32xf32>, vector<8x32xf32> -> vector<8x32xf32>
      %c0_20 = arith.constant 0 : index
      %c0_21 = arith.constant 0 : index
      %20 = vector.load %arg7[%c0_20, %c0_21] : memref<1x32xf32, #tpu.memory_space<vmem>>, vector<1x32xf32>
      %21 = vector.broadcast %20 : vector<1x32xf32> to vector<8x32xf32>
      %22 = arith.addf %19, %21 : vector<8x32xf32>
      %c0_22 = arith.constant 0 : index
      %c0_23 = arith.constant 0 : index
      %23 = vector.load %arg8[%c0_22, %c0_23] : memref<8x32xf32, #tpu.memory_space<vmem>>, vector<8x32xf32>
      tpu.vector_store %arg8[%c0_22, %c0_23], %17 {strides = array<i32>} : memref<8x32xf32, #tpu.memory_space<vmem>>, vector<8x32xf32>,
      %c0_24 = arith.constant 0 : index
      %c0_25 = arith.constant 0 : index
      %24 = vector.load %arg9[%c0_24, %c0_25] : memref<8x32xf32, #tpu.memory_space<vmem>>, vector<8x32xf32>
      tpu.vector_store %arg9[%c0_24, %c0_25], %22 {strides = array<i32>} : memref<8x32xf32, #tpu.memory_space<vmem>>, vector<8x32xf32>,
      %25 = arith.mulf %22, %22 : vector<8x32xf32>
      %cst_26 = arith.constant dense<0.000000e+00> : vector<8xf32>
      %26 = vector.multi_reduction <add>, %25, %cst_26 [1] : vector<8x32xf32> to vector<8xf32>
      %27 = vector.shape_cast %26 : vector<8xf32> to vector<8x1xf32>
      %28 = arith.mulf %12, %12 : vector<8x32xf32>
      %cst_27 = arith.constant dense<0.000000e+00> : vector<8xf32>
      %29 = vector.multi_reduction <add>, %28, %cst_27 [1] : vector<8x32xf32> to vector<8xf32>
      %30 = vector.shape_cast %29 : vector<8xf32> to vector<8x1xf32>
      %31 = arith.mulf %17, %17 : vector<8x32xf32>
      %cst_28 = arith.constant dense<0.000000e+00> : vector<8xf32>
      %32 = vector.multi_reduction <add>, %31, %cst_28 [1] : vector<8x32xf32> to vector<8xf32>
      %33 = vector.shape_cast %32 : vector<8xf32> to vector<8x1xf32>
      %cst_29 = arith.constant 1.000000e-16 : f32
      %34 = vector.broadcast %cst_29 : f32 to vector<8x1xf32>
      %35 = arith.maximumf %27, %34 : vector<8x1xf32>
      %36 = math.rsqrt %35 : vector<8x1xf32>
      %cst_30 = arith.constant 1.000000e-16 : f32
      %37 = vector.broadcast %cst_30 : f32 to vector<8x1xf32>
      %38 = arith.maximumf %30, %37 : vector<8x1xf32>
      %39 = math.rsqrt %38 : vector<8x1xf32>
      %cst_31 = arith.constant 1.000000e-16 : f32
      %40 = vector.broadcast %cst_31 : f32 to vector<8x1xf32>
      %41 = arith.maximumf %33, %40 : vector<8x1xf32>
      %42 = math.rsqrt %41 : vector<8x1xf32>
      %43 = arith.mulf %22, %12 : vector<8x32xf32>
      %cst_32 = arith.constant dense<0.000000e+00> : vector<8xf32>
      %44 = vector.multi_reduction <add>, %43, %cst_32 [1] : vector<8x32xf32> to vector<8xf32>
      %45 = vector.shape_cast %44 : vector<8xf32> to vector<8x1xf32>
      %46 = arith.mulf %45, %36 : vector<8x1xf32>
      %47 = arith.mulf %46, %39 : vector<8x1xf32>
      %c0_33 = arith.constant 0 : index
      %c0_34 = arith.constant 0 : index
      %48 = vector.load %arg10[%c0_33, %c0_34] : memref<8x1xf32, #tpu.memory_space<vmem>>, vector<8x1xf32>
      tpu.vector_store %arg10[%c0_33, %c0_34], %47 {strides = array<i32>} : memref<8x1xf32, #tpu.memory_space<vmem>>, vector<8x1xf32>,
      %49 = arith.mulf %17, %22 : vector<8x32xf32>
      %cst_35 = arith.constant dense<0.000000e+00> : vector<8xf32>
      %50 = vector.multi_reduction <add>, %49, %cst_35 [1] : vector<8x32xf32> to vector<8xf32>
      %51 = vector.shape_cast %50 : vector<8xf32> to vector<8x1xf32>
      %52 = arith.mulf %51, %42 : vector<8x1xf32>
      %53 = arith.mulf %52, %36 : vector<8x1xf32>
      %c0_36 = arith.constant 0 : index
      %c0_37 = arith.constant 0 : index
      %54 = vector.load %arg11[%c0_36, %c0_37] : memref<8x1xf32, #tpu.memory_space<vmem>>, vector<8x1xf32>
      tpu.vector_store %arg11[%c0_36, %c0_37], %53 {strides = array<i32>} : memref<8x1xf32, #tpu.memory_space<vmem>>, vector<8x1xf32>,
    } else {
    }
    return
  }
  func.func @transform_0(%arg0: i32, %arg1: i32) -> (i32, i32) {
    %c0_i32 = arith.constant 0 : i32
    return %arg0, %arg1 : i32, i32
  }
  func.func @transform_1(%arg0: i32, %arg1: i32) -> (i32, i32) {
    %c0_i32 = arith.constant 0 : i32
    %c0_i32_0 = arith.constant 0 : i32
    return %arg1, %c0_i32 : i32, i32
  }
  func.func @transform_2(%arg0: i32, %arg1: i32) -> (i32, i32) {
    %c0_i32 = arith.constant 0 : i32
    %c0_i32_0 = arith.constant 0 : i32
    %c0_i32_1 = arith.constant 0 : i32
    return %c0_i32, %c0_i32_0 : i32, i32
  }
  func.func @transform_3(%arg0: i32, %arg1: i32) -> (i32, i32) {
    %c0_i32 = arith.constant 0 : i32
    %c0_i32_0 = arith.constant 0 : i32
    %c0_i32_1 = arith.constant 0 : i32
    return %c0_i32, %c0_i32_0 : i32, i32
  }
  func.func @transform_4(%arg0: i32, %arg1: i32) -> (i32, i32) {
    %c0_i32 = arith.constant 0 : i32
    %c0_i32_0 = arith.constant 0 : i32
    %c0_i32_1 = arith.constant 0 : i32
    return %c0_i32, %c0_i32_0 : i32, i32
  }
  func.func @transform_5(%arg0: i32, %arg1: i32) -> (i32, i32) {
    %c0_i32 = arith.constant 0 : i32
    %c0_i32_0 = arith.constant 0 : i32
    %c0_i32_1 = arith.constant 0 : i32
    return %c0_i32, %c0_i32_0 : i32, i32
  }
  func.func @transform_6(%arg0: i32, %arg1: i32) -> (i32, i32) {
    %c0_i32 = arith.constant 0 : i32
    %c0_i32_0 = arith.constant 0 : i32
    return %arg0, %c0_i32 : i32, i32
  }
  func.func @transform_7(%arg0: i32, %arg1: i32) -> (i32, i32) {
    %c0_i32 = arith.constant 0 : i32
    %c0_i32_0 = arith.constant 0 : i32
    return %arg0, %c0_i32 : i32, i32
  }
  func.func @transform_8(%arg0: i32, %arg1: i32) -> (i32, i32) {
    %c0_i32 = arith.constant 0 : i32
    %c0_i32_0 = arith.constant 0 : i32
    return %arg0, %c0_i32 : i32, i32
  }
  func.func @transform_9(%arg0: i32, %arg1: i32) -> (i32, i32) {
    %c0_i32 = arith.constant 0 : i32
    %c0_i32_0 = arith.constant 0 : i32
    return %arg0, %c0_i32 : i32, i32
  }
}

</mosaic_0001>

<llo_original>
// kernel: bmmf_filters_forward.1
$region0: #{bmmf_filters_forward.1}
  #allocation0 [shape = 'u32[]', space=smem, size = 0x4, offset = 0x4, fixed_abs, tag = 'smem constant byte address 0x4 - core index']
  #allocation1 [shape = 'u32[144,128]{1,0:T(1,128)}', space=vmem, size = 0x12000, scoped, tag = 'internal scratch']
  #allocation2 [shape = 'f32[8,32]{1,0:T(8,128)}', space=vmem, size = 0x1000, scoped, tag = 'scratch operand']
  %s0 = inlined_call_operand.vmem [shape: f32[8,128], index: 0, kind: input, shape index: {}]
  %s1 = inlined_call_operand.vmem [shape: f32[128,32], index: 1, kind: input, shape index: {}]
  %s2 = inlined_call_operand.vmem [shape: f32[32,32], index: 2, kind: input, shape index: {}]
  %s3 = inlined_call_operand.vmem [shape: f32[1,32], index: 3, kind: input, shape index: {}]
  %s4 = inlined_call_operand.vmem [shape: f32[32,32], index: 4, kind: input, shape index: {}]
  %s5 = inlined_call_operand.vmem [shape: f32[1,32], index: 5, kind: input, shape index: {}]
  %s6 = inlined_call_operand.hbm [shape: f32[8,32], index: 6, kind: output, shape index: {0}]
  %s7 = inlined_call_operand.hbm [shape: f32[8,32], index: 7, kind: output, shape index: {1}]
  %s8 = inlined_call_operand.vmem [shape: f32[8,1], index: 8, kind: output, shape index: {2}]
  %s9 = inlined_call_operand.vmem [shape: f32[8,1], index: 9, kind: output, shape index: {3}]
  %10 = xla_tuple %s6, %s7, %s8, %s9
  %s11 = sld [smem:[#allocation0]]
  $region66: #{bmmf_filters_forward.1} parent=0
    _
  %s13 = ssub.s32 1, %s11
  %s14 = scalar_select 0, %s13, %s11
  $region1: #{bmmf_filters_forward.1} parent=0
    #allocation3 [shape = 'u8[4096]{0}', space=vmem, size = 0x1000, scoped, tag = 'output window, operand 0, single buffered']
    #allocation4 [shape = 's32[1]{0}', space=sflag, size = 0x4, scoped, tag = 'scoped memory for bmmf_filters_forward.1']
    #allocation5 [shape = 'u8[4096]{0}', space=vmem, size = 0x1000, scoped, tag = 'output window, operand 1, single buffered']
    #allocation6 [shape = 's32[1]{0}', space=sflag, size = 0x4, scoped, tag = 'scoped memory for bmmf_filters_forward.1']
    %15 = vsyncpa [#allocation4], 0
    %16 = vsyncpa [#allocation6], 0
    // Predicated region
    $region2: #{bmmf_filters_forward.1} parent=1 // pred_check
      _
    $region3: #{bmmf_filters_forward.1} parent=1 // pred_check_branch
      %18 = sbr.rel (0) target = $region5
    $region4: #{bmmf_filters_forward.1} parent=1 // pred_region
      _
    $region5: #{bmmf_filters_forward.1} parent=1 // pred_fallthru
      _
    // Predicated region
    $region6: #{bmmf_filters_forward.1} parent=1 // pred_check
      _
    $region7: #{bmmf_filters_forward.1} parent=1 // pred_check_branch
      %20 = sbr.rel (0) target = $region9
    $region8: #{bmmf_filters_forward.1} parent=1 // pred_region
      _
    $region9: #{bmmf_filters_forward.1} parent=1 // pred_fallthru
      _
    // Predicated region
    $region10: #{bmmf_filters_forward.1} parent=1 // pred_check
      _
    $region11: #{bmmf_filters_forward.1} parent=1 // pred_check_branch
      %22 = sbr.rel (0) target = $region13
    $region12: #{bmmf_filters_forward.1} parent=1 // pred_region
      _
    $region13: #{bmmf_filters_forward.1} parent=1 // pred_fallthru
      _
    // Predicated region
    $region14: #{bmmf_filters_forward.1} parent=1 // pred_check
      _
    $region15: #{bmmf_filters_forward.1} parent=1 // pred_check_branch
      %24 = sbr.rel (0) target = $region17
    $region16: #{bmmf_filters_forward.1} parent=1 // pred_region
      _
    $region17: #{bmmf_filters_forward.1} parent=1 // pred_fallthru
      _
    // Predicated region
    $region18: #{bmmf_filters_forward.1} parent=1 // pred_check
      _
    $region19: #{bmmf_filters_forward.1} parent=1 // pred_check_branch
      %26 = sbr.rel (0) target = $region21
    $region20: #{bmmf_filters_forward.1} parent=1 // pred_region
      _
    $region21: #{bmmf_filters_forward.1} parent=1 // pred_fallthru
      _
    // Predicated region
    $region22: #{bmmf_filters_forward.1} parent=1 // pred_check
      _
    $region23: #{bmmf_filters_forward.1} parent=1 // pred_check_branch
      %28 = sbr.rel (0) target = $region25
    $region24: #{bmmf_filters_forward.1} parent=1 // pred_region
      _
    $region25: #{bmmf_filters_forward.1} parent=1 // pred_fallthru
      _
    %p29 = scmp.eq.s32.totalorder 0, 0
    // Predicated region
    $region26: #{bmmf_filters_forward.1} parent=1 // pred_check
      %p30 = pneg %p29
    $region27: #{bmmf_filters_forward.1} parent=1 // pred_check_branch
      %32 = sbr.rel (%p30) target = $region29
    $region28: #{bmmf_filters_forward.1} parent=1 // pred_region
      %vm33 = vcmask 261120
      %34 = vst.msk [vmem:[#allocation2] sm:$0xff] %vm33, 0.0
    $region29: #{bmmf_filters_forward.1} parent=1 // pred_fallthru
      _
    %v35 = vld [vmem:[#allocation2] sm:$0xff]
    %v36 = vld [vmem:[%s0] sm:$0xff]
    %v37 = vld [vmem:[%s1] sm:$0xff]
    %v38 = vld [vmem:[%s1 + $0x8] sm:$0xff]
    %v39 = vld [vmem:[%s1 + $0x10] sm:$0xff]
    %v40 = vld [vmem:[%s1 + $0x18] sm:$0xff]
    %v41 = vld [vmem:[%s1 + $0x20] sm:$0xff]
    %v42 = vld [vmem:[%s1 + $0x28] sm:$0xff]
    %v43 = vld [vmem:[%s1 + $0x30] sm:$0xff]
    %v44 = vld [vmem:[%s1 + $0x38] sm:$0xff]
    %v45 = vld [vmem:[%s1 + $0x40] sm:$0xff]
    %v46 = vld [vmem:[%s1 + $0x48] sm:$0xff]
    %v47 = vld [vmem:[%s1 + $0x50] sm:$0xff]
    %v48 = vld [vmem:[%s1 + $0x58] sm:$0xff]
    %v49 = vld [vmem:[%s1 + $0x60] sm:$0xff]
    %v50 = vld [vmem:[%s1 + $0x68] sm:$0xff]
    %v51 = vld [vmem:[%s1 + $0x70] sm:$0xff]
    %v52 = vld [vmem:[%s1 + $0x78] sm:$0xff]
    %53 = vmatprep.subr.mxu0 0.0
    %54 = vmatpush1.msra.mxu0 %v52
    %55 = vmatprep.subr.mxu0 0.0
    %56 = vmatpush1.msra.mxu0 %v51
    %57 = vmatprep.subr.mxu0 0.0
    %58 = vmatpush1.msra.mxu0 %v50
    %59 = vmatprep.subr.mxu0 0.0
    %60 = vmatpush1.msra.mxu0 %v49
    %61 = vmatprep.subr.mxu0 0.0
    %62 = vmatpush1.msra.mxu0 %v48
    %63 = vmatprep.subr.mxu0 0.0
    %64 = vmatpush1.msra.mxu0 %v47
    %65 = vmatprep.subr.mxu0 0.0
    %66 = vmatpush1.msra.mxu0 %v46
    %67 = vmatprep.subr.mxu0 0.0
    %68 = vmatpush1.msra.mxu0 %v45
    %69 = vmatprep.subr.mxu0 0.0
    %70 = vmatpush1.msra.mxu0 %v44
    %71 = vmatprep.subr.mxu0 0.0
    %72 = vmatpush1.msra.mxu0 %v43
    %73 = vmatprep.subr.mxu0 0.0
    %74 = vmatpush1.msra.mxu0 %v42
    %75 = vmatprep.subr.mxu0 0.0
    %76 = vmatpush1.msra.mxu0 %v41
    %77 = vmatprep.subr.mxu0 0.0
    %78 = vmatpush1.msra.mxu0 %v40
    %79 = vmatprep.subr.mxu0 0.0
    %80 = vmatpush1.msra.mxu0 %v39
    %81 = vmatprep.subr.mxu0 0.0
    %82 = vmatpush1.msra.mxu0 %v38
    %83 = vmatprep.subr.mxu0 0.0
    %84 = vmatpush1.msra.mxu0 %v37
    %85 = vmatprep.subr.mxu0 0.0
    %86 = vmatpush2.msra.mxu0 0.0
    %87 = vmatprep.subr.mxu0 0.0
    %88 = vmatpush2.msra.mxu0 0.0
    %89 = vmatprep.subr.mxu0 0.0
    %90 = vmatpush2.msra.mxu0 0.0
    %91 = vmatprep.subr.mxu0 0.0
    %92 = vmatpush2.msra.mxu0 0.0
    %93 = vmatprep.subr.mxu0 0.0
    %94 = vmatpush2.msra.mxu0 0.0
    %95 = vmatprep.subr.mxu0 0.0
    %96 = vmatpush2.msra.mxu0 0.0
    %97 = vmatprep.subr.mxu0 0.0
    %98 = vmatpush2.msra.mxu0 0.0
    %99 = vmatprep.subr.mxu0 0.0
    %100 = vmatpush2.msra.mxu0 0.0
    %101 = vmatprep.subr.mxu0 0.0
    %102 = vmatpush2.msra.mxu0 0.0
    %103 = vmatprep.subr.mxu0 0.0
    %104 = vmatpush2.msra.mxu0 0.0
    %105 = vmatprep.subr.mxu0 0.0
    %106 = vmatpush2.msra.mxu0 0.0
    %107 = vmatprep.subr.mxu0 0.0
    %108 = vmatpush2.msra.mxu0 0.0
    %109 = vmatprep.subr.mxu0 0.0
    %110 = vmatpush2.msra.mxu0 0.0
    %111 = vmatprep.subr.mxu0 0.0
    %112 = vmatpush2.msra.mxu0 0.0
    %113 = vmatprep.subr.mxu0 0.0
    %114 = vmatpush2.msra.mxu0 0.0
    %115 = vmatprep.subr.mxu0 0.0
    %116 = vmatpush2.msra.mxu0 0.0
    %117 = vmatprep.mubr.f32.mxu0 0.0
    %118 = vmatmul.mubr.f32.gmra.mxu0 %v36
    %v119 = vpop.f32.mrf.mxu0
    %v120 = vadd.f32 0.0, %v119
    %v121 = vpop.f32.mrf.mxu0
    %122 = vdwg.mxu0
    %v123 = vadd.f32 %v35, %v120
    %vm124 = vcmask 261120
    %125 = vst.msk [vmem:[#allocation2] sm:$0xff] %vm124, %v123
    // Predicated region
    $region30: #{bmmf_filters_forward.1} parent=1 // pred_check
      %p126 = pneg %p29
    $region31: #{bmmf_filters_forward.1} parent=1 // pred_check_branch
      %128 = sbr.rel (%p126) target = $region33
    $region32: #{bmmf_filters_forward.1} parent=1 // pred_region
      %v129 = vld [vmem:[#allocation2] sm:$0xff]
      %v130 = vld [vmem:[%s2] sm:$0xff]
      %v131 = vld [vmem:[%s2 + $0x8] sm:$0xff]
      %v132 = vld [vmem:[%s2 + $0x10] sm:$0xff]
      %v133 = vld [vmem:[%s2 + $0x18] sm:$0xff]
      %v134 = vld [vmem:[%s3] sm:$0x1]
      %v136 = vlaneseq
      %v137 = vshrl.u32 %v136, 7
      %v138 = vsub.s32 0, %v137
      %v139 = vrot.slane %v134, %v138
      %v142 = vsel %vm124, %v129, 0
      %v145 = vsel %vm124, %v130, 0
      %v148 = vsel %vm124, %v131, 0
      %v151 = vsel %vm124, %v132, 0
      %v154 = vsel %vm124, %v133, 0
      %156 = vmatprep.subr.mxu0 0.0
      %157 = vmatpush1.xpose.msra.mxu0 0.0
      %158 = vmatprep.subr.mxu0 0.0
      %159 = vmatpush1.xpose.msra.mxu0 0.0
      %160 = vmatprep.subr.mxu0 0.0
      %161 = vmatpush1.xpose.msra.mxu0 0.0
      %162 = vmatprep.subr.mxu0 0.0
      %163 = vmatpush1.xpose.msra.mxu0 0.0
      %164 = vmatprep.subr.mxu0 0.0
      %165 = vmatpush1.xpose.msra.mxu0 0.0
      %166 = vmatprep.subr.mxu0 0.0
      %167 = vmatpush1.xpose.msra.mxu0 0.0
      %168 = vmatprep.subr.mxu0 0.0
      %169 = vmatpush1.xpose.msra.mxu0 0.0
      %170 = vmatprep.subr.mxu0 0.0
      %171 = vmatpush1.xpose.msra.mxu0 0.0
      %172 = vmatprep.subr.mxu0 0.0
      %173 = vmatpush1.xpose.msra.mxu0 0.0
      %174 = vmatprep.subr.mxu0 0.0
      %175 = vmatpush1.xpose.msra.mxu0 0.0
      %176 = vmatprep.subr.mxu0 0.0
      %177 = vmatpush1.xpose.msra.mxu0 0.0
      %178 = vmatprep.subr.mxu0 0.0
      %179 = vmatpush1.xpose.msra.mxu0 0.0
      %180 = vmatprep.subr.mxu0 0.0
      %181 = vmatpush1.xpose.msra.mxu0 %v154
      %182 = vmatprep.subr.mxu0 0.0
      %183 = vmatpush1.xpose.msra.mxu0 %v151
      %184 = vmatprep.subr.mxu0 0.0
      %185 = vmatpush1.xpose.msra.mxu0 %v148
      %186 = vmatprep.subr.mxu0 0.0
      %187 = vmatpush1.xpose.msra.mxu0 %v145
      %188 = vmatprep.subr.mxu0 0.0
      %189 = vmatpush2.xpose.msra.mxu0 0.0
      %190 = vmatprep.subr.mxu0 0.0
      %191 = vmatpush2.xpose.msra.mxu0 0.0
      %192 = vmatprep.subr.mxu0 0.0
      %193 = vmatpush2.xpose.msra.mxu0 0.0
      %194 = vmatprep.subr.mxu0 0.0
      %195 = vmatpush2.xpose.msra.mxu0 0.0
      %196 = vmatprep.subr.mxu0 0.0
      %197 = vmatpush2.xpose.msra.mxu0 0.0
      %198 = vmatprep.subr.mxu0 0.0
      %199 = vmatpush2.xpose.msra.mxu0 0.0
      %200 = vmatprep.subr.mxu0 0.0
      %201 = vmatpush2.xpose.msra.mxu0 0.0
      %202 = vmatprep.subr.mxu0 0.0
      %203 = vmatpush2.xpose.msra.mxu0 0.0
      %204 = vmatprep.subr.mxu0 0.0
      %205 = vmatpush2.xpose.msra.mxu0 0.0
      %206 = vmatprep.subr.mxu0 0.0
      %207 = vmatpush2.xpose.msra.mxu0 0.0
      %208 = vmatprep.subr.mxu0 0.0
      %209 = vmatpush2.xpose.msra.mxu0 0.0
      %210 = vmatprep.subr.mxu0 0.0
      %211 = vmatpush2.xpose.msra.mxu0 0.0
      %212 = vmatprep.subr.mxu0 0.0
      %213 = vmatpush2.xpose.msra.mxu0 0.0
      %214 = vmatprep.subr.mxu0 0.0
      %215 = vmatpush2.xpose.msra.mxu0 0.0
      %216 = vmatprep.subr.mxu0 0.0
      %217 = vmatpush2.xpose.msra.mxu0 0.0
      %218 = vmatprep.subr.mxu0 0.0
      %219 = vmatpush2.xpose.msra.mxu0 0.0
      %220 = vmatprep.mubr.f32.mxu0 0.0
      %221 = vmatmul.mubr.f32.gmra.mxu0 %v142
      %v222 = vpop.f32.mrf.mxu0
      %v223 = vadd.f32 %v139, %v222
      %v224 = vpop.f32.mrf.mxu0
      %225 = vdwg.mxu0
      %v226 = vld [vmem:[%s4] sm:$0xff]
      %v227 = vld [vmem:[%s4 + $0x8] sm:$0xff]
      %v228 = vld [vmem:[%s4 + $0x10] sm:$0xff]
      %v229 = vld [vmem:[%s4 + $0x18] sm:$0xff]
      %v230 = vld [vmem:[%s5] sm:$0x1]
      %v232 = vlaneseq
      %v233 = vshrl.u32 %v232, 7
      %v234 = vsub.s32 0, %v233
      %v235 = vrot.slane %v230, %v234
      %v238 = vsel %vm124, %v226, 0
      %v241 = vsel %vm124, %v227, 0
      %v244 = vsel %vm124, %v228, 0
      %v247 = vsel %vm124, %v229, 0
      %249 = vmatprep.subr.mxu0 0.0
      %250 = vmatpush1.xpose.msra.mxu0 0.0
      %251 = vmatprep.subr.mxu0 0.0
      %252 = vmatpush1.xpose.msra.mxu0 0.0
      %253 = vmatprep.subr.mxu0 0.0
      %254 = vmatpush1.xpose.msra.mxu0 0.0
      %255 = vmatprep.subr.mxu0 0.0
      %256 = vmatpush1.xpose.msra.mxu0 0.0
      %257 = vmatprep.subr.mxu0 0.0
      %258 = vmatpush1.xpose.msra.mxu0 0.0
      %259 = vmatprep.subr.mxu0 0.0
      %260 = vmatpush1.xpose.msra.mxu0 0.0
      %261 = vmatprep.subr.mxu0 0.0
      %262 = vmatpush1.xpose.msra.mxu0 0.0
      %263 = vmatprep.subr.mxu0 0.0
      %264 = vmatpush1.xpose.msra.mxu0 0.0
      %265 = vmatprep.subr.mxu0 0.0
      %266 = vmatpush1.xpose.msra.mxu0 0.0
      %267 = vmatprep.subr.mxu0 0.0
      %268 = vmatpush1.xpose.msra.mxu0 0.0
      %269 = vmatprep.subr.mxu0 0.0
      %270 = vmatpush1.xpose.msra.mxu0 0.0
      %271 = vmatprep.subr.mxu0 0.0
      %272 = vmatpush1.xpose.msra.mxu0 0.0
      %273 = vmatprep.subr.mxu0 0.0
      %274 = vmatpush1.xpose.msra.mxu0 %v247
      %275 = vmatprep.subr.mxu0 0.0
      %276 = vmatpush1.xpose.msra.mxu0 %v244
      %277 = vmatprep.subr.mxu0 0.0
      %278 = vmatpush1.xpose.msra.mxu0 %v241
      %279 = vmatprep.subr.mxu0 0.0
      %280 = vmatpush1.xpose.msra.mxu0 %v238
      %281 = vmatprep.subr.mxu0 0.0
      %282 = vmatpush2.xpose.msra.mxu0 0.0
      %283 = vmatprep.subr.mxu0 0.0
      %284 = vmatpush2.xpose.msra.mxu0 0.0
      %285 = vmatprep.subr.mxu0 0.0
      %286 = vmatpush2.xpose.msra.mxu0 0.0
      %287 = vmatprep.subr.mxu0 0.0
      %288 = vmatpush2.xpose.msra.mxu0 0.0
      %289 = vmatprep.subr.mxu0 0.0
      %290 = vmatpush2.xpose.msra.mxu0 0.0
      %291 = vmatprep.subr.mxu0 0.0
      %292 = vmatpush2.xpose.msra.mxu0 0.0
      %293 = vmatprep.subr.mxu0 0.0
      %294 = vmatpush2.xpose.msra.mxu0 0.0
      %295 = vmatprep.subr.mxu0 0.0
      %296 = vmatpush2.xpose.msra.mxu0 0.0
      %297 = vmatprep.subr.mxu0 0.0
      %298 = vmatpush2.xpose.msra.mxu0 0.0
      %299 = vmatprep.subr.mxu0 0.0
      %300 = vmatpush2.xpose.msra.mxu0 0.0
      %301 = vmatprep.subr.mxu0 0.0
      %302 = vmatpush2.xpose.msra.mxu0 0.0
      %303 = vmatprep.subr.mxu0 0.0
      %304 = vmatpush2.xpose.msra.mxu0 0.0
      %305 = vmatprep.subr.mxu0 0.0
      %306 = vmatpush2.xpose.msra.mxu0 0.0
      %307 = vmatprep.subr.mxu0 0.0
      %308 = vmatpush2.xpose.msra.mxu0 0.0
      %309 = vmatprep.subr.mxu0 0.0
      %310 = vmatpush2.xpose.msra.mxu0 0.0
      %311 = vmatprep.subr.mxu0 0.0
      %312 = vmatpush2.xpose.msra.mxu0 0.0
      %313 = vmatprep.mubr.f32.mxu0 0.0
      %314 = vmatmul.mubr.f32.gmra.mxu0 %v142
      %v315 = vpop.f32.mrf.mxu0
      %v316 = vadd.f32 %v235, %v315
      %v317 = vpop.f32.mrf.mxu0
      %318 = vdwg.mxu0
      %319 = vst.msk [vmem:[#allocation3] sm:$0xff] %vm124, %v223
      %320 = vst.msk [vmem:[#allocation5] sm:$0xff] %vm124, %v316
      %v321 = vmul.f32 %v316, %v316
      %v322 = vsel %vm124, %v321, 0.0
      %323 = vadd.xlane.f32.xlu0 %v322
      %v324 = vpop.xlane.xlu0 %323
      %v325 = vmul.f32 %v129, %v129
      %v326 = vsel %vm124, %v325, 0.0
      %327 = vadd.xlane.f32.xlu0 %v326
      %v328 = vpop.xlane.xlu0 %327
      %v329 = vmul.f32 %v223, %v223
      %v330 = vsel %vm124, %v329, 0.0
      %331 = vadd.xlane.f32.xlu0 %v330
      %v332 = vpop.xlane.xlu0 %331
      %v333 = vmax.f32 %v324, 1e-16
      %v334 = vrsqrt.pop %v333
      %v335 = vmax.f32 %v328, 1e-16
      %v336 = vrsqrt.pop %v335
      %v337 = vmax.f32 %v332, 1e-16
      %v338 = vrsqrt.pop %v337
      %v339 = vmul.f32 %v316, %v129
      %v340 = vsel %vm124, %v339, 0.0
      %341 = vadd.xlane.f32.xlu0 %v340
      %v342 = vpop.xlane.xlu0 %341
      %v343 = vmul.f32 %v342, %v334
      %v344 = vmul.f32 %v343, %v336
      %vm345 = vcmask 7168
      %346 = vst.msk [vmem:[%s8] sm:$0xff] %vm345, %v344
      %v347 = vmul.f32 %v223, %v316
      %v348 = vsel %vm124, %v347, 0.0
      %349 = vadd.xlane.f32.xlu0 %v348
      %v350 = vpop.xlane.xlu0 %349
      %v351 = vmul.f32 %v350, %v338
      %v352 = vmul.f32 %v351, %v334
      %353 = vst.msk [vmem:[%s9] sm:$0xff] %vm345, %v352
    $region33: #{bmmf_filters_forward.1} parent=1 // pred_fallthru
      _
    // Predicated region
    $region34: #{bmmf_filters_forward.1} parent=1 // pred_check
      _
    $region35: #{bmmf_filters_forward.1} parent=1 // pred_check_branch
      %355 = sbr.rel (0) target = $region37
    $region36: #{bmmf_filters_forward.1} parent=1 // pred_region
      %s357 = ssub.s32 128, 128
      %358 = vsyncadd [#allocation4], %s357
      %s360 = sshll.u32 [#allocation3], 4
      %s361 = int_to_ptr.vmem [resolvable:$true] %s360
      %363 = dma.vmem_to_hbm [thread:$0]  %s361, 128, %s6, [#allocation4]
    $region37: #{bmmf_filters_forward.1} parent=1 // pred_fallthru
      _
    // Predicated region
    $region38: #{bmmf_filters_forward.1} parent=1 // pred_check
      _
    $region39: #{bmmf_filters_forward.1} parent=1 // pred_check_branch
      %365 = sbr.rel (0) target = $region41
    $region40: #{bmmf_filters_forward.1} parent=1 // pred_region
      %s367 = ssub.s32 128, 128
      %368 = vsyncadd [#allocation6], %s367
      %s370 = sshll.u32 [#allocation5], 4
      %s371 = int_to_ptr.vmem [resolvable:$true] %s370
      %373 = dma.vmem_to_hbm [thread:$0]  %s371, 128, %s7, [#allocation6]
    $region41: #{bmmf_filters_forward.1} parent=1 // pred_fallthru
      _
    // Predicated region
    $region42: #{bmmf_filters_forward.1} parent=1 // pred_check
      _
    $region43: #{bmmf_filters_forward.1} parent=1 // pred_check_branch
      %375 = sbr.rel (0) target = $region45
    $region44: #{bmmf_filters_forward.1} parent=1 // pred_region
      _
    $region45: #{bmmf_filters_forward.1} parent=1 // pred_fallthru
      _
    // Predicated region
    $region46: #{bmmf_filters_forward.1} parent=1 // pred_check
      _
    $region47: #{bmmf_filters_forward.1} parent=1 // pred_check_branch
      %377 = sbr.rel (0) target = $region49
    $region48: #{bmmf_filters_forward.1} parent=1 // pred_region
      _
    $region49: #{bmmf_filters_forward.1} parent=1 // pred_fallthru
      _
    // Predicated region
    $region50: #{bmmf_filters_forward.1} parent=1 // pred_check
      _
    $region51: #{bmmf_filters_forward.1} parent=1 // pred_check_branch
      %379 = sbr.rel (0) target = $region53
    $region52: #{bmmf_filters_forward.1} parent=1 // pred_region
      %380 = dma.done [#allocation4], 128
    $region53: #{bmmf_filters_forward.1} parent=1 // pred_fallthru
      _
    // Predicated region
    $region54: #{bmmf_filters_forward.1} parent=1 // pred_check
      _
    $region55: #{bmmf_filters_forward.1} parent=1 // pred_check_branch
      %382 = sbr.rel (0) target = $region57
    $region56: #{bmmf_filters_forward.1} parent=1 // pred_region
      %383 = dma.done [#allocation6], 128
    $region57: #{bmmf_filters_forward.1} parent=1 // pred_fallthru
      _
    // Predicated region
    $region58: #{bmmf_filters_forward.1} parent=1 // pred_check
      _
    $region59: #{bmmf_filters_forward.1} parent=1 // pred_check_branch
      %385 = sbr.rel (0) target = $region61
    $region60: #{bmmf_filters_forward.1} parent=1 // pred_region
      _
    $region61: #{bmmf_filters_forward.1} parent=1 // pred_fallthru
      _
    // Predicated region
    $region62: #{bmmf_filters_forward.1} parent=1 // pred_check
      _
    $region63: #{bmmf_filters_forward.1} parent=1 // pred_check_branch
      %387 = sbr.rel (0) target = $region65
    $region64: #{bmmf_filters_forward.1} parent=1 // pred_region
      _
    $region65: #{bmmf_filters_forward.1} parent=1 // pred_fallthru
      _
    %388 = vsyncpa [#allocation4], 1
    %389 = vsyncpa [#allocation6], 1

</llo_original>
